<compile_context>
chip_gen: v7x
topology: tpu7x:2x2x1
jax: 0.10.0
libtpu: 0.0.40
codegen_flags: <defaults>
</compile_context>

<pallas_src>
import jax
import jax.numpy as jnp
from jax import lax
from jax.experimental import pallas as pl
from jax.experimental.pallas import tpu as pltpu


def _round_up(x, m):
    return (x + m - 1) // m * m


def _device_vmem_bytes():
    try:
        return int(pltpu.get_tpu_info().vmem_capacity_bytes)
    except Exception:
        return 64 << 20  # conservative (v7x per-core) fallback


def _generator_kernel(x_ref, w_ref, b_ref, o_ref, m_ref, l_ref):
    # x_ref: (tm, d_model) bf16  -- row tile (constant along the vocab grid axis)
    # w_ref: (d_model, tn) bf16  -- one vocab tile of the projection weight
    # b_ref: (1, V_pad)    f32   -- full bias, resident (constant index_map)
    # o_ref: (tm, V_pad)   f32   -- resident across the vocab grid axis
    # m_ref, l_ref: (tm,1) f32   -- online log-sum-exp state (scratch)
    j = pl.program_id(1)
    nj = pl.num_programs(1)
    tn = w_ref.shape[1]

    @pl.when(j == 0)
    def _init():
        m_ref[...] = jnp.full(m_ref.shape, -jnp.inf, m_ref.dtype)
        l_ref[...] = jnp.zeros(l_ref.shape, l_ref.dtype)

    col = pl.multiple_of(j * tn, 128)  # tn is always a multiple of 128

    logits = jnp.dot(x_ref[...], w_ref[...], preferred_element_type=jnp.float32)
    logits = logits + b_ref[:, pl.ds(col, tn)]

    # Stash raw logits for this vocab tile into the resident output block.
    o_ref[:, pl.ds(col, tn)] = logits

    # Online log-sum-exp update (hidden under the MXU: VPU/XLU/EUP slots).
    m_old = m_ref[...]
    m_new = jnp.maximum(m_old, jnp.max(logits, axis=-1, keepdims=True))
    l_ref[...] = l_ref[...] * jnp.exp(m_old - m_new) + jnp.sum(
        jnp.exp(logits - m_new), axis=-1, keepdims=True)
    m_ref[...] = m_new

    @pl.when(j == nj - 1)
    def _finalize():
        norm = m_ref[...] + jnp.log(l_ref[...])  # (tm, 1)

        def body(t, carry):
            c = pl.multiple_of(t * tn, 128)
            o_ref[:, pl.ds(c, tn)] = o_ref[:, pl.ds(c, tn)] - norm
            return carry

        # Chunked single subtract pass -> bounded vreg/VMEM temporaries.
        lax.fori_loop(0, nj, body, 0)


def generator_forward(x, weight, bias, *, tm=512, tn=2048):
    """log_softmax(x @ weight + bias, axis=-1).

    x: [batch, seq, d_model]; weight: [d_model, vocab] (transposed vs. nn.Linear's
    [vocab, d_model] storage); bias: [vocab].  Returns f32 [batch, seq, vocab].
    """
    batch, seq, d_model = x.shape
    dmw, vocab = weight.shape
    assert dmw == d_model, "weight must be [d_model, vocab]"

    M = batch * seq

    # ---------------- tile selection (VMEM-capacity aware) ----------------
    vmem_cap = _device_vmem_bytes()
    budget = int(vmem_cap * 0.8)

    tn_eff = min(_round_up(tn, 128), _round_up(vocab, 128))
    tm_eff = min(_round_up(tm, 8), _round_up(M, 8))
    if M > 8:
        # Keep >= 2 row tiles so the "parallel" axis can feed both TensorCores.
        tm_eff = min(tm_eff, _round_up(-(-M // 2), 8))

    def footprint(tm_e, tn_e):
        v_pad = _round_up(vocab, tn_e)
        return (2 * tm_e * d_model * 2      # x tile (bf16), double-buffered
                + 2 * d_model * tn_e * 2    # weight tile (bf16), double-buffered
                + 2 * v_pad * 4             # resident bias (count 2 buffers, safe)
                + 2 * tm_e * v_pad * 4      # resident f32 output tile + writeback buffer
                + 4 * tm_e * 4)             # online-lse scratch (m, l)

    while footprint(tm_eff, tn_eff) > budget:
        if tm_eff > 64:
            tm_eff = _round_up(tm_eff // 2, 8)
        elif tn_eff > 512:
            tn_eff = _round_up(tn_eff // 2, 128)
        elif tm_eff > 8:
            tm_eff = _round_up(tm_eff // 2, 8)
        elif tn_eff > 128:
            tn_eff = _round_up(tn_eff // 2, 128)
        else:
            break

    V_pad = _round_up(vocab, tn_eff)
    M_pad = _round_up(M, tm_eff)

    # ---------------- operand prep ----------------
    # bf16 inputs feed the MXU at native rate; accumulation stays f32 in-kernel.
    x2d = x.reshape(M, d_model).astype(jnp.bfloat16)
    if M_pad != M:
        x2d = jnp.pad(x2d, ((0, M_pad - M), (0, 0)))
    w_bf16 = weight.astype(jnp.bfloat16)
    b_f32 = bias.astype(jnp.float32)
    if V_pad != vocab:
        # Pad vocab to a multiple of the tile; padded columns get a huge negative
        # bias so they vanish from the log-sum-exp (and are sliced off afterwards).
        w_bf16 = jnp.pad(w_bf16, ((0, 0), (0, V_pad - vocab)))
        b_f32 = jnp.pad(b_f32, ((0, V_pad - vocab),), constant_values=-1e30)
    b2d = b_f32.reshape(1, V_pad)

    grid = (M_pad // tm_eff, V_pad // tn_eff)

    vmem_limit = int(min(vmem_cap,
                         max(32 << 20, footprint(tm_eff, tn_eff) + (8 << 20))))

    out = pl.pallas_call(
        _generator_kernel,
        out_shape=jax.ShapeDtypeStruct((M_pad, V_pad), jnp.float32),
        grid_spec=pltpu.PrefetchScalarGridSpec(
            num_scalar_prefetch=0,
            grid=grid,
            in_specs=[
                pl.BlockSpec((tm_eff, d_model), lambda i, j: (i, 0)),   # row tile of x
                pl.BlockSpec((d_model, tn_eff), lambda i, j: (0, j)),   # vocab tile of W
                pl.BlockSpec((1, V_pad), lambda i, j: (0, 0)),          # full bias, hoisted
            ],
            out_specs=pl.BlockSpec((tm_eff, V_pad), lambda i, j: (i, 0)),
            scratch_shapes=[
                pltpu.VMEM((tm_eff, 1), jnp.float32),   # running max m
                pltpu.VMEM((tm_eff, 1), jnp.float32),   # running sum l
            ],
        ),
        compiler_params=pltpu.CompilerParams(
            dimension_semantics=("parallel", "arbitrary"),
            vmem_limit_bytes=vmem_limit,
        ),
    )(x2d, w_bf16, b2d)

    out = out[:M, :vocab]
    return out.reshape(batch, seq, vocab)


if __name__ == "__main__":
    # Small shapes consistent with a transformer generator head.
    batch, seq, d_model, vocab = 2, 8, 32, 128

    key = jax.random.PRNGKey(0)
    kx, kw, kb = jax.random.split(key, 3)

    # Deterministic "Linear(d_model, vocab)" parameters (PyTorch-style uniform init).
    bound = 1.0 / (d_model ** 0.5)
    # PyTorch nn.Linear stores weight as [vocab, d_model]; we keep the transposed
    # [d_model, vocab] layout so the kernel's matmul is x @ W.
    weight = jax.random.uniform(kw, (d_model, vocab), jnp.float32, -bound, bound)
    bias = jax.random.uniform(kb, (vocab,), jnp.float32, -bound, bound)

    x = jax.random.normal(kx, (batch, seq, d_model), jnp.float32)

    out = generator_forward(x, weight, bias)
    out = jax.block_until_ready(out)

    # Reference: the kernel feeds bf16 x / W to the MXU with f32 accumulation, so compare
    # against the bf16-rounded-input reference (same numerics), tight tolerance.
    xb = x.astype(jnp.bfloat16).astype(jnp.float32)
    wb = weight.astype(jnp.bfloat16).astype(jnp.float32)
    ref = jax.nn.log_softmax(jnp.einsum("bsd,dv->bsv", xb, wb) + bias, axis=-1)

    assert out.shape == (batch, seq, vocab)
    assert jnp.allclose(out, ref, atol=1e-3, rtol=1e-3), "mismatch vs reference"

    # Sanity check against the full-f32 module semantics (looser: bf16 input rounding).
    ref_f32 = jax.nn.log_softmax(jnp.einsum("bsd,dv->bsv", x, weight) + bias, axis=-1)
    assert jnp.allclose(out, ref_f32, atol=1e-1, rtol=1e-1), "semantic mismatch vs f32 module"

    print("KERNEL_OK")
</pallas_src>

<mosaic_0001>
module attributes {stable_mosaic.version = 11 : i64} {
  func.func @_generator_kernel(%arg0: i32, %arg1: i32, %arg2: memref<8x32xbf16, #tpu.memory_space<vmem>>, %arg3: memref<32x128xbf16, #tpu.memory_space<vmem>>, %arg4: memref<1x128xf32, #tpu.memory_space<vmem>>, %arg5: memref<8x128xf32, #tpu.memory_space<vmem>>, %arg6: memref<8x1xf32, #tpu.memory_space<vmem>>, %arg7: memref<8x1xf32, #tpu.memory_space<vmem>>) attributes {dimension_semantics = [#tpu.dimension_semantics<parallel>, #tpu.dimension_semantics<arbitrary>], iteration_bounds = array<i64: 2, 1>, scalar_prefetch = 0 : i64, scratch_operands = 2 : i64, tpu.core_type = #tpu.core_type<tc>, window_params = [{transform_indices = @transform_0, window_bounds = array<i64: 8, 32>}, {transform_indices = @transform_1, window_bounds = array<i64: 32, 128>}, {pipeline_mode = #tpu.pipeline_mode<synchronous>, transform_indices = @transform_2, window_bounds = array<i64: 1, 128>}, {transform_indices = @transform_3, window_bounds = array<i64: 8, 128>}]} {
    %c0_i32 = arith.constant 0 : i32
    %0 = arith.cmpi eq, %arg1, %c0_i32 : i32
    %1 = arith.extui %0 : i1 to i32
    %c0_i32_0 = arith.constant 0 : i32
    %2 = arith.cmpi ne, %1, %c0_i32_0 : i32
    scf.if %2 {
      %cst_18 = arith.constant 0xFF800000 : f32
      %33 = vector.broadcast %cst_18 : f32 to vector<8x1xf32>
      %c0_19 = arith.constant 0 : index
      %c0_20 = arith.constant 0 : index
      %34 = vector.load %arg6[%c0_19, %c0_20] : memref<8x1xf32, #tpu.memory_space<vmem>>, vector<8x1xf32>
      tpu.vector_store %arg6[%c0_19, %c0_20], %33 {strides = array<i32>} : memref<8x1xf32, #tpu.memory_space<vmem>>, vector<8x1xf32>,
      %cst_21 = arith.constant 0.000000e+00 : f32
      %35 = vector.broadcast %cst_21 : f32 to vector<8x1xf32>
      %c0_22 = arith.constant 0 : index
      %c0_23 = arith.constant 0 : index
      %36 = vector.load %arg7[%c0_22, %c0_23] : memref<8x1xf32, #tpu.memory_space<vmem>>, vector<8x1xf32>
      tpu.vector_store %arg7[%c0_22, %c0_23], %35 {strides = array<i32>} : memref<8x1xf32, #tpu.memory_space<vmem>>, vector<8x1xf32>,
    } else {
    }
    %c128_i32 = arith.constant 128 : i32
    %3 = arith.muli %arg1, %c128_i32 : i32
    %4 = tpu.assume_multiple %3, 128 : i32
    %c0 = arith.constant 0 : index
    %c0_1 = arith.constant 0 : index
    %5 = vector.load %arg2[%c0, %c0_1] : memref<8x32xbf16, #tpu.memory_space<vmem>>, vector<8x32xbf16>
    %c0_2 = arith.constant 0 : index
    %c0_3 = arith.constant 0 : index
    %6 = vector.load %arg3[%c0_2, %c0_3] : memref<32x128xbf16, #tpu.memory_space<vmem>>, vector<32x128xbf16>
    %cst = arith.constant dense<0.000000e+00> : vector<8x128xf32>
    %7 = tpu.matmul %5, %6, %cst {dimension_numbers = #tpu.dot_dimension_numbers<[1], [0], [0], [1], [0, 0, 1, 1], [], []>} : vector<8x32xbf16>, vector<32x128xbf16>, vector<8x128xf32> -> vector<8x128xf32>
    %c0_4 = arith.constant 0 : index
    %8 = arith.index_cast %4 : i32 to index
    %9 = vector.load %arg4[%c0_4, %8] : memref<1x128xf32, #tpu.memory_space<vmem>>, vector<1x128xf32>
    %10 = vector.broadcast %9 : vector<1x128xf32> to vector<8x128xf32>
    %11 = arith.addf %7, %10 : vector<8x128xf32>
    %c0_5 = arith.constant 0 : index
    %12 = arith.index_cast %4 : i32 to index
    %13 = vector.load %arg5[%c0_5, %12] : memref<8x128xf32, #tpu.memory_space<vmem>>, vector<8x128xf32>
    tpu.vector_store %arg5[%c0_5, %12], %11 {strides = array<i32>} : memref<8x128xf32, #tpu.memory_space<vmem>>, vector<8x128xf32>,
    %c0_6 = arith.constant 0 : index
    %c0_7 = arith.constant 0 : index
    %14 = vector.load %arg6[%c0_6, %c0_7] : memref<8x1xf32, #tpu.memory_space<vmem>>, vector<8x1xf32>
    %cst_8 = arith.constant dense<0xFF800000> : vector<8xf32>
    %15 = vector.multi_reduction <maximumf>, %11, %cst_8 [1] : vector<8x128xf32> to vector<8xf32>
    %16 = vector.shape_cast %15 : vector<8xf32> to vector<8x1xf32>
    %17 = arith.maximumf %14, %16 : vector<8x1xf32>
    %c0_9 = arith.constant 0 : index
    %c0_10 = arith.constant 0 : index
    %18 = vector.load %arg7[%c0_9, %c0_10] : memref<8x1xf32, #tpu.memory_space<vmem>>, vector<8x1xf32>
    %19 = arith.subf %14, %17 : vector<8x1xf32>
    %20 = math.exp %19 : vector<8x1xf32>
    %21 = arith.mulf %18, %20 : vector<8x1xf32>
    %22 = vector.broadcast %17 : vector<8x1xf32> to vector<8x128xf32>
    %23 = arith.subf %11, %22 : vector<8x128xf32>
    %24 = math.exp %23 : vector<8x128xf32>
    %cst_11 = arith.constant dense<0.000000e+00> : vector<8xf32>
    %25 = vector.multi_reduction <add>, %24, %cst_11 [1] : vector<8x128xf32> to vector<8xf32>
    %26 = vector.shape_cast %25 : vector<8xf32> to vector<8x1xf32>
    %27 = arith.addf %21, %26 : vector<8x1xf32>
    %c0_12 = arith.constant 0 : index
    %c0_13 = arith.constant 0 : index
    %28 = vector.load %arg7[%c0_12, %c0_13] : memref<8x1xf32, #tpu.memory_space<vmem>>, vector<8x1xf32>
    tpu.vector_store %arg7[%c0_12, %c0_13], %27 {strides = array<i32>} : memref<8x1xf32, #tpu.memory_space<vmem>>, vector<8x1xf32>,
    %c0_14 = arith.constant 0 : index
    %c0_15 = arith.constant 0 : index
    %29 = vector.load %arg6[%c0_14, %c0_15] : memref<8x1xf32, #tpu.memory_space<vmem>>, vector<8x1xf32>
    tpu.vector_store %arg6[%c0_14, %c0_15], %17 {strides = array<i32>} : memref<8x1xf32, #tpu.memory_space<vmem>>, vector<8x1xf32>,
    %c0_i32_16 = arith.constant 0 : i32
    %30 = arith.cmpi eq, %arg1, %c0_i32_16 : i32
    %31 = arith.extui %30 : i1 to i32
    %c0_i32_17 = arith.constant 0 : i32
    %32 = arith.cmpi ne, %31, %c0_i32_17 : i32
    scf.if %32 {
      %c0_18 = arith.constant 0 : index
      %c0_19 = arith.constant 0 : index
      %33 = vector.load %arg6[%c0_18, %c0_19] : memref<8x1xf32, #tpu.memory_space<vmem>>, vector<8x1xf32>
      %c0_20 = arith.constant 0 : index
      %c0_21 = arith.constant 0 : index
      %34 = vector.load %arg7[%c0_20, %c0_21] : memref<8x1xf32, #tpu.memory_space<vmem>>, vector<8x1xf32>
      %35 = math.log %34 : vector<8x1xf32>
      %36 = arith.addf %33, %35 : vector<8x1xf32>
      %c0_i32_22 = arith.constant 0 : i32
      %c128_i32_23 = arith.constant 128 : i32
      %37 = arith.muli %c0_i32_22, %c128_i32_23 : i32
      %38 = tpu.assume_multiple %37, 128 : i32
      %c0_24 = arith.constant 0 : index
      %39 = arith.index_cast %38 : i32 to index
      %40 = vector.load %arg5[%c0_24, %39] : memref<8x128xf32, #tpu.memory_space<vmem>>, vector<8x128xf32>
      %41 = vector.broadcast %36 : vector<8x1xf32> to vector<8x128xf32>
      %42 = arith.subf %40, %41 : vector<8x128xf32>
      %c0_25 = arith.constant 0 : index
      %43 = arith.index_cast %38 : i32 to index
      %44 = vector.load %arg5[%c0_25, %43] : memref<8x128xf32, #tpu.memory_space<vmem>>, vector<8x128xf32>
      tpu.vector_store %arg5[%c0_25, %43], %42 {strides = array<i32>} : memref<8x128xf32, #tpu.memory_space<vmem>>, vector<8x128xf32>,
      %c1_i32 = arith.constant 1 : i32
    } else {
    }
    return
  }
  func.func @transform_0(%arg0: i32, %arg1: i32) -> (i32, i32) {
    %c0_i32 = arith.constant 0 : i32
    %c0_i32_0 = arith.constant 0 : i32
    return %arg0, %c0_i32 : i32, i32
  }
  func.func @transform_1(%arg0: i32, %arg1: i32) -> (i32, i32) {
    %c0_i32 = arith.constant 0 : i32
    %c0_i32_0 = arith.constant 0 : i32
    return %c0_i32, %arg1 : i32, i32
  }
  func.func @transform_2(%arg0: i32, %arg1: i32) -> (i32, i32) {
    %c0_i32 = arith.constant 0 : i32
    %c0_i32_0 = arith.constant 0 : i32
    %c0_i32_1 = arith.constant 0 : i32
    return %c0_i32, %c0_i32_0 : i32, i32
  }
  func.func @transform_3(%arg0: i32, %arg1: i32) -> (i32, i32) {
    %c0_i32 = arith.constant 0 : i32
    %c0_i32_0 = arith.constant 0 : i32
    return %arg0, %c0_i32 : i32, i32
  }
}

</mosaic_0001>

<llo_original>
// kernel: tpu_custom_call.1
$region0: #{tpu_custom_call.1}
  #allocation0 [shape = 'u32[]', space=smem, size = 0x4, offset = 0x4, fixed_abs, tag = 'smem constant byte address 0x4 - core index']
  #allocation1 [shape = 'u32[144,128]{1,0:T(1,128)}', space=vmem, size = 0x12000, scoped, tag = 'internal scratch']
  #allocation2 [shape = 'f32[8,1]{1,0:T(8,128)}', space=vmem, size = 0x1000, scoped, tag = 'scratch operand']
  #allocation3 [shape = 'f32[8,1]{1,0:T(8,128)}', space=vmem, size = 0x1000, scoped, tag = 'scratch operand']
  %s0 = inlined_call_operand.hbm [shape: bf16[16,32], index: 0, kind: input, shape index: {}]
  %s1 = inlined_call_operand.hbm [shape: bf16[32,128], index: 1, kind: input, shape index: {}]
  %s2 = inlined_call_operand.vmem [shape: f32[1,128], index: 2, kind: input, shape index: {}]
  %s3 = inlined_call_operand.hbm [shape: f32[16,128], index: 3, kind: output, shape index: {}]
  %s4 = sld [smem:[#allocation0]]
  $region61: #{tpu_custom_call.1} parent=0
    _
  %s6 = ssub.s32 1, %s4
  %s7 = scalar_select 0, %s6, %s4
  $region1: #{tpu_custom_call.1} parent=0
    #allocation4 [shape = 'u8[4096]{0}', space=vmem, size = 0x1000, scoped, tag = 'input window, operand 0']
    #allocation5 [shape = 's32[2]{0}', space=sflag, size = 0x8, scoped, tag = 'scoped memory for tpu_custom_call.1']
    #allocation6 [shape = 's32[2]{0}', space=sflag, size = 0x8, scoped, tag = 'scoped memory for tpu_custom_call.1']
    #allocation7 [shape = 'u8[8192]{0}', space=vmem, size = 0x2000, scoped, tag = 'input window, operand 1, single buffered']
    #allocation8 [shape = 's32[1]{0}', space=sflag, size = 0x4, scoped, tag = 'scoped memory for tpu_custom_call.1']
    #allocation9 [shape = 'u8[8192]{0}', space=vmem, size = 0x2000, scoped, tag = 'output window, operand 0']
    %8 = vsyncpa [#allocation5], 0
    %s9 = scalar_lea.sflag [#allocation5], 1
    %10 = vsyncpa %s9, 0
    %11 = vsyncpa [#allocation8], 0
    %12 = vsyncpa [#allocation6], 0
    %s13 = scalar_lea.sflag [#allocation6], 1
    %14 = vsyncpa %s13, 0
    loop: start=0, step=1, limit=4
    $region2: #{tpu_custom_call.1} parent=1 // loop_pre_header
      _
    $region3: #{tpu_custom_call.1} parent=1 // loop_header
      %s16 = sphi 0, %s20
      %p17 = scmp.ge.s32.totalorder %s16, 4
      %s23 = sphi 0, %s35
      %s24 = sphi 0, %s31
      %s25 = sphi 0, %s23
      %s26 = sphi 0, %s24
      %s27 = sphi 0, %s25
      %s28 = sphi 0, %s26
      %s38 = sphi 0, %s40
      %s41 = sphi 0, %s38
      %s42 = sphi 0, %s41
      %s58 = sphi 0, %s42
      %s64 = sphi 0, %s66
      %s67 = sphi 0, %s64
      %s68 = sphi 0, %s67
      %s84 = sphi 0, %s68
      %s88 = sphi 0, %s88
      %s90 = sphi 0, %s88
      %s91 = sphi 0, %s90
      %s105 = sphi 0, %s91
      %s111 = sphi 0, %s113
      %s114 = sphi 0, %s111
      %s115 = sphi 0, %s114
      %s131 = sphi 0, %s115
    $region4: #{tpu_custom_call.1} parent=1 // loop_header_branch
      %19 = sbr.rel (%p17) target = $region8
    $region5: #{tpu_custom_call.1} parent=1 // loop_body
      %s21 = ssub.s32 %s16, 1
      %s22 = ssub.s32 %s16, 2
      %s29 = sadd.s32 1, %s24
      %p30 = scmp.ge.s32.totalorder %s29, 1
      %s31 = scalar_select %p30, 0, %s29
      %s32 = sadd.s32 1, %s23
      %s33 = scalar_select %p30, %s32, %s23
      %p34 = scmp.ge.s32.totalorder %s33, 2
      %s35 = scalar_select %p34, 0, %s33
      %s36 = ssub.s32 %s23, %s35
      %p37 = scmp.eq.s32.totalorder %s36, 0
      %s39 = sadd.s32 %s38, 1
      %s40 = scalar_select %p37, %s38, %s39
      %p43 = pneg %p37
      %p44 = scmp.eq.s32.totalorder %s16, 1
      %p45 = por %p43, %p44
      %p46 = scmp.ne.s32.totalorder %s38, %s41
      %p47 = scmp.eq.s32.totalorder %s16, 0
      %p48 = por %p46, %p47
      %p49 = scmp.ne.s32.totalorder %s38, %s41
      %p50 = scmp.eq.s32.totalorder %s21, 1
      %p51 = por %p49, %p50
      %p52 = scmp.ne.s32.totalorder %s41, %s42
      %p53 = scmp.eq.s32.totalorder %s21, 0
      %p54 = por %p52, %p53
      %p55 = scmp.ne.s32.totalorder %s41, %s42
      %p56 = scmp.eq.s32.totalorder %s22, 1
      %p57 = por %p55, %p56
      %p59 = scmp.ne.s32.totalorder %s42, %s58
      %p60 = scmp.eq.s32.totalorder %s22, 0
      %p61 = por %p59, %p60
      %s62 = ssub.s32 %s24, %s31
      %p63 = scmp.eq.s32.totalorder %s62, 0
      %s65 = sadd.s32 %s64, 1
      %s66 = scalar_select %p63, %s64, %s65
      %p69 = pneg %p63
      %p70 = scmp.eq.s32.totalorder %s16, 1
      %p71 = por %p69, %p70
      %p72 = scmp.ne.s32.totalorder %s64, %s67
      %p73 = scmp.eq.s32.totalorder %s16, 0
      %p74 = por %p72, %p73
      %p75 = scmp.ne.s32.totalorder %s64, %s67
      %p76 = scmp.eq.s32.totalorder %s21, 1
      %p77 = por %p75, %p76
      %p78 = scmp.ne.s32.totalorder %s67, %s68
      %p79 = scmp.eq.s32.totalorder %s21, 0
      %p80 = por %p78, %p79
      %p81 = scmp.ne.s32.totalorder %s67, %s68
      %p82 = scmp.eq.s32.totalorder %s22, 1
      %p83 = por %p81, %p82
      %p85 = scmp.ne.s32.totalorder %s68, %s84
      %p86 = scmp.eq.s32.totalorder %s22, 0
      %p87 = por %p85, %p86
      %s89 = sadd.s32 %s88, 1
      %p92 = scmp.eq.s32.totalorder %s16, 1
      %p93 = scmp.ne.s32.totalorder %s88, %s90
      %p94 = scmp.eq.s32.totalorder %s16, 0
      %p95 = por %p93, %p94
      %p96 = scmp.ne.s32.totalorder %s88, %s90
      %p97 = scmp.eq.s32.totalorder %s21, 1
      %p98 = por %p96, %p97
      %p99 = scmp.ne.s32.totalorder %s90, %s91
      %p100 = scmp.eq.s32.totalorder %s21, 0
      %p101 = por %p99, %p100
      %p102 = scmp.ne.s32.totalorder %s90, %s91
      %p103 = scmp.eq.s32.totalorder %s22, 1
      %p104 = por %p102, %p103
      %p106 = scmp.ne.s32.totalorder %s91, %s105
      %p107 = scmp.eq.s32.totalorder %s22, 0
      %p108 = por %p106, %p107
      %s109 = ssub.s32 %s23, %s35
      %p110 = scmp.eq.s32.totalorder %s109, 0
      %s112 = sadd.s32 %s111, 1
      %s113 = scalar_select %p110, %s111, %s112
      %p116 = pneg %p110
      %p117 = scmp.eq.s32.totalorder %s16, 1
      %p118 = por %p116, %p117
      %p119 = scmp.ne.s32.totalorder %s111, %s114
      %p120 = scmp.eq.s32.totalorder %s16, 0
      %p121 = por %p119, %p120
      %p122 = scmp.ne.s32.totalorder %s111, %s114
      %p123 = scmp.eq.s32.totalorder %s21, 1
      %p124 = por %p122, %p123
      %p125 = scmp.ne.s32.totalorder %s114, %s115
      %p126 = scmp.eq.s32.totalorder %s21, 0
      %p127 = por %p125, %p126
      %p128 = scmp.ne.s32.totalorder %s114, %s115
      %p129 = scmp.eq.s32.totalorder %s22, 1
      %p130 = por %p128, %p129
      %p132 = scmp.ne.s32.totalorder %s115, %s131
      %p133 = scmp.eq.s32.totalorder %s22, 0
      %p134 = por %p132, %p133
      %p135 = scmp.le.s32.totalorder 1, %s16
      %p136 = scmp.lt.s32.totalorder %s16, 3
      %p137 = pnand %p135, %p136
      %p138 = pneg %p137
      // Predicated region
      $region9: #{tpu_custom_call.1} parent=5 // pred_check
        _
      $region10: #{tpu_custom_call.1} parent=5 // pred_check_branch
        %140 = sbr.rel (%p137) target = $region12
      $region11: #{tpu_custom_call.1} parent=5 // pred_region
        %s141 = ssub.s32 %s16, 1
        // Predicated region
        $region13: #{tpu_custom_call.1} parent=11 // pred_check
          %p142 = pneg %p80
        $region14: #{tpu_custom_call.1} parent=11 // pred_check_branch
          %144 = sbr.rel (%p142) target = $region16
        $region15: #{tpu_custom_call.1} parent=11 // pred_region
          %s146 = ssub.s32 256, 256
          %147 = vsyncadd [#allocation8], %s146
          %s148 = smul.addr %s26, 64
          %s149 = scalar_lea.hbm %s1, %s148
          %s150 = sshll.u32 [#allocation7], 4
          %s151 = int_to_ptr.vmem [resolvable:$true] %s150
          %156 = dma.hbm_to_vmem [thread:$0]  %s149, 256, %s151, [#allocation8], 64, 64, 4
        $region16: #{tpu_custom_call.1} parent=11 // pred_fallthru
          _
        // Predicated region
        $region17: #{tpu_custom_call.1} parent=11 // pred_check
          %p157 = pneg %p101
        $region18: #{tpu_custom_call.1} parent=11 // pred_check_branch
          %159 = sbr.rel (%p157) target = $region20
        $region19: #{tpu_custom_call.1} parent=11 // pred_region
          _
        $region20: #{tpu_custom_call.1} parent=11 // pred_fallthru
          _
      $region12: #{tpu_custom_call.1} parent=5 // pred_fallthru
        _
      %p160 = scmp.lt.s32.totalorder %s16, 2
      // Predicated region
      $region21: #{tpu_custom_call.1} parent=5 // pred_check
        %p161 = pneg %p160
      $region22: #{tpu_custom_call.1} parent=5 // pred_check_branch
        %163 = sbr.rel (%p161) target = $region24
      $region23: #{tpu_custom_call.1} parent=5 // pred_region
        // Predicated region
        $region25: #{tpu_custom_call.1} parent=23 // pred_check
          %p164 = pneg %p48
        $region26: #{tpu_custom_call.1} parent=23 // pred_check_branch
          %166 = sbr.rel (%p164) target = $region28
        $region27: #{tpu_custom_call.1} parent=23 // pred_region
          %s167 = sand.u32 %s38, 1
          %s168 = scalar_lea.sflag [#allocation5], %s167
          %s169 = sand.u32 %s38, 1
          %s170 = smul.addr %s169, 4
          %s171 = scalar_lea.vmem [#allocation4], %s170
          %s173 = ssub.s32 64, 64
          %174 = vsyncadd %s168, %s173
          %s175 = smul.addr %s23, 64
          %s176 = scalar_lea.hbm %s0, %s175
          %s178 = sshll.u32 %s171, 4
          %s179 = int_to_ptr.vmem [resolvable:$true] %s178
          %181 = dma.hbm_to_vmem [thread:$0]  %s176, 64, %s179, %s168
        $region28: #{tpu_custom_call.1} parent=23 // pred_fallthru
          _
      $region24: #{tpu_custom_call.1} parent=5 // pred_fallthru
        _
      %p182 = scmp.le.s32.totalorder 1, %s16
      %p183 = scmp.lt.s32.totalorder %s16, 3
      %p184 = pnand %p182, %p183
      %p185 = pneg %p184
      // Predicated region
      $region29: #{tpu_custom_call.1} parent=5 // pred_check
        _
      $region30: #{tpu_custom_call.1} parent=5 // pred_check_branch
        %187 = sbr.rel (%p184) target = $region32
      $region31: #{tpu_custom_call.1} parent=5 // pred_region
        %s188 = ssub.s32 %s16, 1
        %s189 = sand.u32 %s41, 1
        %s190 = scalar_lea.sflag [#allocation5], %s189
        %s191 = sand.u32 %s41, 1
        %s192 = smul.addr %s191, 4
        %s193 = scalar_lea.vmem [#allocation4], %s192
        // Predicated region
        $region33: #{tpu_custom_call.1} parent=31 // pred_check
          %p194 = pneg %p54
        $region34: #{tpu_custom_call.1} parent=31 // pred_check_branch
          %196 = sbr.rel (%p194) target = $region36
        $region35: #{tpu_custom_call.1} parent=31 // pred_region
          %197 = dma.done %s190, 64
        $region36: #{tpu_custom_call.1} parent=31 // pred_fallthru
          _
        // Predicated region
        $region37: #{tpu_custom_call.1} parent=31 // pred_check
          %p198 = pneg %p80
        $region38: #{tpu_custom_call.1} parent=31 // pred_check_branch
          %200 = sbr.rel (%p198) target = $region40
        $region39: #{tpu_custom_call.1} parent=31 // pred_region
          %201 = dma.done [#allocation8], 256
        $region40: #{tpu_custom_call.1} parent=31 // pred_fallthru
          _
        %s202 = sand.u32 %s41, 1
        %s203 = scalar_lea.sflag [#allocation5], %s202
        %s204 = sand.u32 %s41, 1
        %s205 = smul.addr %s204, 4
        %s206 = scalar_lea.vmem [#allocation4], %s205
        %p207 = pneg %p54
        %p208 = pneg %p51
        %p209 = pneg %p80
        %p210 = pneg %p77
        %p211 = pneg %p101
        %p212 = pneg %p98
        %p213 = pneg %p127
        %p214 = pneg %p124
        %s215 = sand.u32 %s114, 1
        %s216 = scalar_lea.sflag [#allocation6], %s215
        %s217 = sand.u32 %s114, 1
        %s218 = smul.addr %s217, 8
        %s219 = scalar_lea.vmem [#allocation9], %s218
        %p221 = scmp.eq.s32.totalorder %s26, 0
        // Predicated region
        $region41: #{tpu_custom_call.1} parent=31 // pred_check
          %p222 = pneg %p221
        $region42: #{tpu_custom_call.1} parent=31 // pred_check_branch
          %224 = sbr.rel (%p222) target = $region44
        $region43: #{tpu_custom_call.1} parent=31 // pred_region
          %vm225 = vcmask 7168
          %226 = vst.msk [vmem:[#allocation2] sm:$0xff] %vm225, -inf
          %227 = vst.msk [vmem:[#allocation3] sm:$0xff] %vm225, 0.0
        $region44: #{tpu_custom_call.1} parent=31 // pred_fallthru
          _
        %s228 = smul.u32 %s26, 128
        %v229 = vld [vmem:[%s193] sm:$0xf]
        %v230 = vld [vmem:[#allocation7] sm:$0xf]
        %v231 = vld [vmem:[#allocation7 + $0x4] sm:$0xf]
        %v232 = vld [vmem:[#allocation7 + $0x8] sm:$0xf]
        %v233 = vld [vmem:[#allocation7 + $0xc] sm:$0xf]
        %s234 = sshra.s32 %s228, 7
        %s235 = sand.u32 %s228, 127
        %s236 = scalar_lea.vmem %s2, %s234
        %v237 = vld [vmem:[%s236] sm:$0x1]
        %v239 = vlaneseq
        %v240 = vshrl.u32 %v239, 7
        %v241 = vsub.s32 0, %v240
        %v242 = vrot.slane %v237, %v241
        %v248 = vunpack.c.l.b16 %v230
        %v249 = vunpack.c.l.b16 %v231
        %v250 = vunpack.c.l.b16 %v232
        %v251 = vunpack.c.l.b16 %v233
        %v252 = vpack.c.b16 %v249, %v248
        %v253 = vpack.c.b16 %v251, %v250
        %vm256 = vcmask 261120
        %v258 = vsel %vm256, %v229, 0
        %260 = vmatprep.subr.bf16.mxu0 0
        %261 = vmatpush1.bf16.msra.mxu0 %v252
        %262 = vmatprep.subr.bf16.mxu0 0
        %263 = vmatpush1.bf16.msra.mxu0 %v253
        %264 = vmatprep.subr.bf16.mxu0 0
        %265 = vmatpush1.bf16.msra.mxu0 0
        %266 = vmatprep.subr.bf16.mxu0 0
        %267 = vmatpush1.bf16.msra.mxu0 0
        %268 = vmatprep.subr.bf16.mxu0 0
        %269 = vmatpush1.bf16.msra.mxu0 0
        %270 = vmatprep.subr.bf16.mxu0 0
        %271 = vmatpush1.bf16.msra.mxu0 0
        %272 = vmatprep.subr.bf16.mxu0 0
        %273 = vmatpush1.bf16.msra.mxu0 0
        %274 = vmatprep.subr.bf16.mxu0 0
        %275 = vmatpush1.bf16.msra.mxu0 0
        %276 = vmatprep.subr.bf16.mxu0 0
        %277 = vmatpush1.bf16.msra.mxu0 0
        %278 = vmatprep.subr.bf16.mxu0 0
        %279 = vmatpush1.bf16.msra.mxu0 0
        %280 = vmatprep.subr.bf16.mxu0 0
        %281 = vmatpush1.bf16.msra.mxu0 0
        %282 = vmatprep.subr.bf16.mxu0 0
        %283 = vmatpush1.bf16.msra.mxu0 0
        %284 = vmatprep.subr.bf16.mxu0 0
        %285 = vmatpush1.bf16.msra.mxu0 0
        %286 = vmatprep.subr.bf16.mxu0 0
        %287 = vmatpush1.bf16.msra.mxu0 0
        %288 = vmatprep.subr.bf16.mxu0 0
        %289 = vmatpush1.bf16.msra.mxu0 0
        %290 = vmatprep.subr.bf16.mxu0 0
        %291 = vmatpush1.bf16.msra.mxu0 0
        %292 = vmatprep.mubr.bf16.mxu0 0
        %293 = vmatmul.mubr.bf16.gmra.mrb[0].mxu0 %v258
        %v294 = vpop.f32.mrb[0].mxu0
        %v295 = vadd.f32 %v242, %v294
        %v296 = vpop.f32.mrb[0].mxu0
        %v297 = vpop.f32.mrb[0].mxu0
        %v298 = vpop.f32.mrb[0].mxu0
        %299 = vdwg.mxu0
        %s300 = scalar_lea.vmem %s219, %s234 [#allocation9]
        %301 = vst [vmem:[%s300] sm:$0xff] %v295
        %v302 = vld [vmem:[#allocation2] sm:$0xff]
        %303 = vmax.xlane.f32.xlu0 %v295
        %v304 = vpop.xlane.xlu0 %303
        %v305 = vmax.f32 %v302, %v304
        %v306 = vld [vmem:[#allocation3] sm:$0xff]
        %v307 = vsub.f32 %v302, %v305
        %v308 = vmul.f32 %v307, 1.442695
        %v309 = vpow.pop %v308
        %v310 = vmul.f32 %v306, %v309
        %312 = vset.pattern.permute.xlu0 0
        %313 = vperm.xlu0 %312, %v305
        %v314 = vpop.permute.xlu0 %313
        %v316 = vsub.f32 %v295, %v314
        %v317 = vmul.f32 %v316, 1.442695
        %v318 = vpow.pop %v317
        %319 = vadd.xlane.f32.xlu0 %v318
        %v320 = vpop.xlane.xlu0 %319
        %v321 = vadd.f32 %v310, %v320
        %vm322 = vcmask 7168
        %323 = vst.msk [vmem:[#allocation3] sm:$0xff] %vm322, %v321
        %324 = vst.msk [vmem:[#allocation2] sm:$0xff] %vm322, %v305
        // Predicated region
        $region45: #{tpu_custom_call.1} parent=31 // pred_check
          %p325 = pneg %p221
        $region46: #{tpu_custom_call.1} parent=31 // pred_check_branch
          %327 = sbr.rel (%p325) target = $region48
        $region47: #{tpu_custom_call.1} parent=31 // pred_region
          %v328 = vld [vmem:[#allocation2] sm:$0xff]
          %v329 = vld [vmem:[#allocation3] sm:$0xff]
          %v330 = vlog2.pop %v329
          %v331 = vmul.f32 %v330, 0.6931472
          %v332 = vadd.f32 %v328, %v331
          %v333 = vld [vmem:[%s219] sm:$0xff]
          %335 = vset.pattern.permute.xlu0 0
          %336 = vperm.xlu0 %335, %v332
          %v337 = vpop.permute.xlu0 %336
          %v339 = vsub.f32 %v333, %v337
          %340 = vst [vmem:[%s219] sm:$0xff] %v339
        $region48: #{tpu_custom_call.1} parent=31 // pred_fallthru
          _
        %s341 = sand.u32 %s114, 1
        %s342 = scalar_lea.sflag [#allocation6], %s341
        %s343 = sand.u32 %s114, 1
        %s344 = smul.addr %s343, 8
        %s345 = scalar_lea.vmem [#allocation9], %s344
        // Predicated region
        $region49: #{tpu_custom_call.1} parent=31 // pred_check
          %p346 = pneg %p124
        $region50: #{tpu_custom_call.1} parent=31 // pred_check_branch
          %348 = sbr.rel (%p346) target = $region52
        $region51: #{tpu_custom_call.1} parent=31 // pred_region
          %s350 = ssub.s32 128, 128
          %351 = vsyncadd %s342, %s350
          %s352 = smul.addr %s25, 128
          %s353 = scalar_lea.hbm %s3, %s352
          %s355 = sshll.u32 %s345, 4
          %s356 = int_to_ptr.vmem [resolvable:$true] %s355
          %358 = dma.vmem_to_hbm [thread:$0]  %s356, 128, %s353, %s342
        $region52: #{tpu_custom_call.1} parent=31 // pred_fallthru
          _
      $region32: #{tpu_custom_call.1} parent=5 // pred_fallthru
        _
      %p359 = scmp.le.s32.totalorder 2, %s16
      // Predicated region
      $region53: #{tpu_custom_call.1} parent=5 // pred_check
        %p360 = pneg %p359
      $region54: #{tpu_custom_call.1} parent=5 // pred_check_branch
        %362 = sbr.rel (%p360) target = $region56
      $region55: #{tpu_custom_call.1} parent=5 // pred_region
        %s363 = ssub.s32 %s16, 2
        // Predicated region
        $region57: #{tpu_custom_call.1} parent=55 // pred_check
          %p364 = pneg %p130
        $region58: #{tpu_custom_call.1} parent=55 // pred_check_branch
          %366 = sbr.rel (%p364) target = $region60
        $region59: #{tpu_custom_call.1} parent=55 // pred_region
          %s367 = sand.u32 %s115, 1
          %s368 = scalar_lea.sflag [#allocation6], %s367
          %s369 = sand.u32 %s115, 1
          %s370 = smul.addr %s369, 8
          %s371 = scalar_lea.vmem [#allocation9], %s370
          %372 = dma.done %s368, 128
        $region60: #{tpu_custom_call.1} parent=55 // pred_fallthru
          _
      $region56: #{tpu_custom_call.1} parent=5 // pred_fallthru
        _
    $region6: #{tpu_custom_call.1} parent=1 // loop_footer
      %s20 = sadd.s32 1, %s16
    $region7: #{tpu_custom_call.1} parent=1 // loop_footer_branch
      %15 = sbr.rel target = $region3
    $region8: #{tpu_custom_call.1} parent=1 // loop_exit
      _
    %373 = vsyncpa [#allocation5], 1
    %s374 = scalar_lea.sflag [#allocation5], 1
    %375 = vsyncpa %s374, 1
    %376 = vsyncpa [#allocation8], 1
    %377 = vsyncpa [#allocation6], 1
    %s378 = scalar_lea.sflag [#allocation6], 1
    %379 = vsyncpa %s378, 1

</llo_original>
